<compile_context>
chip_gen: v6e
topology: v6e:2x2x1
jax: 0.10.0
libtpu: 0.0.40
codegen_flags: <defaults>
</compile_context>

<pallas_src>
import math

import jax
import jax.numpy as jnp
from jax.experimental import pallas as pl
from jax.experimental.pallas import tpu as pltpu


def _flatten_out_shape(shape, start_dim: int = 1, end_dim: int = -1):
    """Output shape of torch-style Flatten(start_dim, end_dim).

    Note: uses `end_dim >= 0` (true nn.Flatten semantics) so end_dim=0 is a
    no-op collapse of a single dim rather than flattening the whole array
    (fixes the end_dim == 0 edge case flagged in review; defaults unaffected).
    """
    ndim = len(shape)
    end = end_dim + 1 if end_dim >= 0 else ndim + end_dim + 1
    middle = shape[start_dim:end]
    flat = math.prod(middle) if len(middle) > 0 else 1
    return tuple(list(shape[:start_dim]) + [flat] + list(shape[end:]))


def _copy_kernel(x_ref, o_ref):
    # Pure lane-dense copy; the reshape already happened (for free) outside.
    o_ref[...] = x_ref[...]


def _pick_tiles(rows: int, cols: int, itemsize: int):
    """Choose (8,128)-legal tile sizes, capped at ~2 MiB per block so that
    double-buffered in+out blocks stay far under even v5e's 16 MiB scoped
    VMEM default."""
    max_block_bytes = 2 * 1024 * 1024

    # Lane (last) dim: multiple of 128, or full extent if not divisible.
    if cols % 128 == 0:
        tile_cols = min(cols, 2048)
    else:
        tile_cols = cols

    # Sublane (second-last) dim: multiple of 8, or full extent if not divisible.
    if rows % 8 == 0:
        budget_rows = max(8, max_block_bytes // max(1, tile_cols * itemsize))
        tile_rows = max(8, (min(rows, budget_rows) // 8) * 8)
        # keep it dividing evenly when easy (rows is a multiple of 8 anyway,
        # partial edge blocks are handled by Pallas masking otherwise)
        tile_rows = min(tile_rows, rows)
    else:
        tile_rows = rows

    return tile_rows, tile_cols


def flatten(x: jax.Array, start_dim: int = 1, end_dim: int = -1) -> jax.Array:
    out_shape = _flatten_out_shape(x.shape, start_dim, end_dim)

    # Metadata-only reshapes (free in XLA): present the data to the kernel as
    # a lane-dense 2D slab (rows, cols) with cols = trailing flattened dim.
    total = math.prod(x.shape) if len(x.shape) > 0 else 1
    cols = out_shape[-1] if len(out_shape) > 0 else 1
    cols = max(cols, 1)
    rows = total // cols if cols > 0 else 1
    rows = max(rows, 1)
    x2d = jnp.reshape(x, (rows, cols))

    itemsize = jnp.dtype(x.dtype).itemsize
    tile_rows, tile_cols = _pick_tiles(rows, cols, itemsize)
    grid = (pl.cdiv(rows, tile_rows), pl.cdiv(cols, tile_cols))

    y2d = pl.pallas_call(
        _copy_kernel,
        out_shape=jax.ShapeDtypeStruct((rows, cols), x.dtype),
        grid_spec=pltpu.PrefetchScalarGridSpec(
            num_scalar_prefetch=0,
            grid=grid,
            in_specs=[pl.BlockSpec((tile_rows, tile_cols), lambda i, j: (i, j))],
            out_specs=pl.BlockSpec((tile_rows, tile_cols), lambda i, j: (i, j)),
        ),
        compiler_params=pltpu.CompilerParams(
            # Both axes independent; lets v7x shard the copy across its 2 TCs.
            dimension_semantics=("parallel", "parallel"),
        ),
        cost_estimate=pl.CostEstimate(
            flops=0,
            transcendentals=0,
            bytes_accessed=2 * total * itemsize,
        ),
    )(x2d)

    # Free reshape back to the true flattened output shape.
    return jnp.reshape(y2d, out_shape)


if __name__ == "__main__":
    key = jax.random.PRNGKey(0)
    # NCHW input consistent with a conv-net feature map: batch=2, C=4, H=W=16.
    x = jax.random.normal(key, (2, 4, 16, 16), dtype=jnp.float32)

    out = flatten(x, start_dim=1, end_dim=-1)
    out = jax.block_until_ready(out)

    # Reference: plain JAX reshape with identical semantics.
    ref = jnp.reshape(x, _flatten_out_shape(x.shape, 1, -1))
    assert out.shape == (2, 4 * 16 * 16), out.shape
    assert out.dtype == x.dtype
    assert bool(jnp.array_equal(out, ref))

    print("KERNEL_OK")
</pallas_src>

<mosaic_0001>
module attributes {stable_mosaic.version = 11 : i64} {
  func.func @_copy_kernel(%arg0: i32, %arg1: i32, %arg2: memref<2x1024xf32, #tpu.memory_space<vmem>>, %arg3: memref<2x1024xf32, #tpu.memory_space<vmem>>) attributes {dimension_semantics = [#tpu.dimension_semantics<parallel>, #tpu.dimension_semantics<parallel>], iteration_bounds = array<i64: 1, 1>, scalar_prefetch = 0 : i64, scratch_operands = 0 : i64, tpu.core_type = #tpu.core_type<tc>, window_params = [{transform_indices = @transform_0, window_bounds = array<i64: 2, 1024>}, {transform_indices = @transform_1, window_bounds = array<i64: 2, 1024>}]} {
    %c0 = arith.constant 0 : index
    %c0_0 = arith.constant 0 : index
    %0 = vector.load %arg2[%c0, %c0_0] : memref<2x1024xf32, #tpu.memory_space<vmem>>, vector<2x1024xf32>
    %c0_1 = arith.constant 0 : index
    %c0_2 = arith.constant 0 : index
    %1 = vector.load %arg3[%c0_1, %c0_2] : memref<2x1024xf32, #tpu.memory_space<vmem>>, vector<2x1024xf32>
    tpu.vector_store %arg3[%c0_1, %c0_2], %0 {strides = array<i32>} : memref<2x1024xf32, #tpu.memory_space<vmem>>, vector<2x1024xf32>,
    return
  }
  func.func @transform_0(%arg0: i32, %arg1: i32) -> (i32, i32) {
    %c0_i32 = arith.constant 0 : i32
    return %arg0, %arg1 : i32, i32
  }
  func.func @transform_1(%arg0: i32, %arg1: i32) -> (i32, i32) {
    %c0_i32 = arith.constant 0 : i32
    return %arg0, %arg1 : i32, i32
  }
}

</mosaic_0001>

<llo_original>
// kernel: tpu_custom_call.1
$region0: #{tpu_custom_call.1}
  #allocation0 [shape = 'u32[]', space=smem, size = 0x4, offset = 0x4, fixed_abs, tag = 'smem constant byte address 0x4 - core index']
  #allocation1 [shape = 'u32[144,128]{1,0:T(1,128)}', space=vmem, size = 0x12000, scoped, tag = 'internal scratch']
  %s0 = inlined_call_operand.hbm [shape: f32[2,1024], index: 0, kind: input, shape index: {}]
  %s1 = inlined_call_operand.hbm [shape: f32[2,1024], index: 1, kind: output, shape index: {}]
  %s2 = sld [smem:[#allocation0]]
  $region18: #{tpu_custom_call.1} parent=0
    _
  %s4 = ssub.s32 1, %s2
  %s5 = scalar_select 0, %s4, %s2
  $region1: #{tpu_custom_call.1} parent=0
    #allocation2 [shape = 'u8[8192]{0}', space=vmem, size = 0x2000, scoped, tag = 'input window, operand 0, single buffered']
    #allocation3 [shape = 's32[1]{0}', space=sflag, size = 0x4, scoped, tag = 'scoped memory for tpu_custom_call.1']
    #allocation4 [shape = 's32[1]{0}', space=sflag, size = 0x4, scoped, tag = 'scoped memory for tpu_custom_call.1']
    #allocation5 [shape = 'u8[8192]{0}', space=vmem, size = 0x2000, scoped, tag = 'output window, operand 0, single buffered']
    %6 = vsyncpa [#allocation3], 0
    %7 = vsyncpa [#allocation4], 0
    // Predicated region
    $region2: #{tpu_custom_call.1} parent=1 // pred_check
      _
    $region3: #{tpu_custom_call.1} parent=1 // pred_check_branch
      %9 = sbr.rel (0) target = $region5
    $region4: #{tpu_custom_call.1} parent=1 // pred_region
      %s11 = ssub.s32 256, 256
      %12 = vsyncadd [#allocation3], %s11
      %s14 = sshll.u32 [#allocation2], 4
      %s15 = int_to_ptr.vmem [resolvable:$true] %s14
      %17 = dma.hbm_to_vmem [thread:$0]  %s0, 256, %s15, [#allocation3]
    $region5: #{tpu_custom_call.1} parent=1 // pred_fallthru
      _
    // Predicated region
    $region6: #{tpu_custom_call.1} parent=1 // pred_check
      _
    $region7: #{tpu_custom_call.1} parent=1 // pred_check_branch
      %19 = sbr.rel (0) target = $region9
    $region8: #{tpu_custom_call.1} parent=1 // pred_region
      %20 = dma.done [#allocation3], 256
    $region9: #{tpu_custom_call.1} parent=1 // pred_fallthru
      _
    %v21 = vld [vmem:[#allocation2] sm:$0xff]
    %v22 = vld [vmem:[#allocation2 + $0x8] sm:$0xff]
    %23 = vst [vmem:[#allocation5] sm:$0xff] %v21
    %24 = vst [vmem:[#allocation5 + $0x8] sm:$0xff] %v22
    // Predicated region
    $region10: #{tpu_custom_call.1} parent=1 // pred_check
      _
    $region11: #{tpu_custom_call.1} parent=1 // pred_check_branch
      %26 = sbr.rel (0) target = $region13
    $region12: #{tpu_custom_call.1} parent=1 // pred_region
      %s28 = ssub.s32 256, 256
      %29 = vsyncadd [#allocation4], %s28
      %s31 = sshll.u32 [#allocation5], 4
      %s32 = int_to_ptr.vmem [resolvable:$true] %s31
      %34 = dma.vmem_to_hbm [thread:$0]  %s32, 256, %s1, [#allocation4]
    $region13: #{tpu_custom_call.1} parent=1 // pred_fallthru
      _
    // Predicated region
    $region14: #{tpu_custom_call.1} parent=1 // pred_check
      _
    $region15: #{tpu_custom_call.1} parent=1 // pred_check_branch
      %36 = sbr.rel (0) target = $region17
    $region16: #{tpu_custom_call.1} parent=1 // pred_region
      %37 = dma.done [#allocation4], 256
    $region17: #{tpu_custom_call.1} parent=1 // pred_fallthru
      _
    %38 = vsyncpa [#allocation3], 1
    %39 = vsyncpa [#allocation4], 1

</llo_original>
